<compile_context>
chip_gen: v7x
topology: tpu7x:2x2x1
jax: 0.10.0
libtpu: 0.0.40
codegen_flags: <defaults>
</compile_context>

<pallas_src>
import math
import functools

import jax
import jax.numpy as jnp
from jax import lax
from jax.experimental import pallas as pl
from jax.experimental.pallas import tpu as pltpu


def _positive_linear_kernel(x_ref, w_ref, bias_ref, o_ref):
    """One row-tile of y = x @ w.T + bias (w already softplus'd + packed)."""
    x = x_ref[...]
    if x.dtype != w_ref.dtype:        # static (trace-time) dtype check
        x = x.astype(w_ref.dtype)
    # Contract the last dim of both operands (F.linear semantics): the MXU
    # consumes the materialized weight directly, no transpose / XLU relayout.
    y = lax.dot_general(x, w_ref[...],
                        dimension_numbers=(((1,), (1,)), ((), ())),
                        preferred_element_type=jnp.float32)
    o_ref[...] = (y + bias_ref[...]).astype(o_ref.dtype)


@functools.partial(jax.jit, static_argnames=("block_rows",))
def positive_linear_hk(x, raw, bias=None, *, block_rows=None):
    """y = x @ softplus(raw).T + bias over arbitrary leading batch dims."""
    *lead, d_in = x.shape
    d_out, raw_d_in = raw.shape
    if raw_d_in != d_in:
        raise ValueError(f"raw.shape[1]={raw_d_in} must equal x feature dim {d_in}")
    if bias is not None and bias.shape != (d_out,):
        raise ValueError(f"bias.shape={bias.shape} must be ({d_out},)")
    n = int(math.prod(lead)) if lead else 1

    # Lane packing (the module's 32x32 case): view `pack` consecutive rows as
    # one lane-dense 128-wide row; multiply by a block-diagonal (128,128)
    # weight so every load/store is an unmasked, lane-dense vst.
    pack = 128 // d_out if (d_in == d_out and 0 < d_out < 128 and 128 % d_out == 0) else 1
    lane_in, lane_out = d_in * pack, d_out * pack
    # TODO(synk): the pack==1 fallback (d_in != d_out or d_out not dividing 128)
    # leaves the output lane width at d_out (<128 -> masked stores); pad the
    # output lanes to 128 if this kernel is ever used beyond the 32x32 shape.

    # ----- softplus weight + bias, hoisted out of the kernel (one-time work).
    w = jnp.logaddexp(raw.astype(jnp.float32), 0.0)           # stable softplus
    if pack > 1:
        w_k = jnp.kron(jnp.eye(pack, dtype=w.dtype), w)       # block-diag (128,128)
    else:
        w_k = w
    w_k = w_k.astype(jnp.bfloat16 if x.dtype == jnp.bfloat16 else jnp.float32)
    if bias is None:
        bias_k = jnp.zeros((1, lane_out), dtype=jnp.float32)
    else:
        bias_k = jnp.tile(bias.reshape(1, d_out).astype(jnp.float32), (1, pack))

    # ----- rows: pad only the <= pack-1 remainder rows (rare path).
    x2 = x.reshape(n, d_in)
    rem = (-n) % pack
    if rem:
        x2 = jnp.pad(x2, ((0, rem), (0, 0)))
    n_rows = n + rem
    n_packed = n_rows // pack
    xp = x2.reshape(n_packed, lane_in)        # free row-major reinterpretation

    # ----- row-tile sizing.
    itemsize = jnp.dtype(x.dtype).itemsize
    if block_rows is None:
        block_rows = 8192 if itemsize >= 4 else 16384
    # Cap the double-buffered x+out pipeline at ~40 MiB so tiles fit v7x's
    # 64 MiB per-core VMEM (v5e/v6e have 128 MiB -> conservative there).
    max_tm = max(8, (40 << 20) // (2 * (lane_in + lane_out) * itemsize))
    tm = min(block_rows, max_tm, n_packed)
    if tm >= n_packed:
        if n_packed >= 16:
            # Enough work to split: >=2 sublane-aligned tiles so both v7x
            # TensorCores get a tile under the "parallel" row axis.
            tm = ((n_packed + 15) // 16) * 8
        else:
            tm = n_packed                      # single tile == full array dim
    else:
        tm = max(8, (tm // 8) * 8)             # sublane-align multi-tile blocks
    grid_m = pl.cdiv(n_packed, tm)             # ragged last block handled by Pallas

    pipe_bytes = 2 * tm * (lane_in + lane_out) * itemsize      # double-buffered x+out
    const_bytes = 2 * (w_k.size * w_k.dtype.itemsize + bias_k.size * 4)
    vmem_limit = int(min(max(32 << 20, pipe_bytes + const_bytes + (4 << 20)), 56 << 20))

    cost = pl.CostEstimate(
        flops=2 * n_packed * lane_in * lane_out,   # MXU MACs on the packed layout
        transcendentals=0,                         # softplus hoisted to the wrapper
        bytes_accessed=(xp.size + n_packed * lane_out) * itemsize
                       + w_k.size * w_k.dtype.itemsize + bias_k.size * 4,
    )

    outp = pl.pallas_call(
        _positive_linear_kernel,
        out_shape=jax.ShapeDtypeStruct((n_packed, lane_out), x.dtype),
        grid_spec=pl.GridSpec(
            grid=(grid_m,),
            in_specs=[
                pl.BlockSpec((tm, lane_in), lambda i: (i, 0)),
                pl.BlockSpec(w_k.shape, lambda i: (0, 0)),       # VMEM-resident
                pl.BlockSpec((1, lane_out), lambda i: (0, 0)),   # VMEM-resident
            ],
            out_specs=pl.BlockSpec((tm, lane_out), lambda i: (i, 0)),
        ),
        compiler_params=pltpu.CompilerParams(
            dimension_semantics=("parallel",),
            vmem_limit_bytes=vmem_limit),
        cost_estimate=cost,
    )(xp, w_k, bias_k)

    out2 = outp.reshape(n_rows, d_out)
    if rem:
        out2 = out2[:n]
    return out2.reshape(*lead, d_out)


if __name__ == "__main__":
    # Shapes consistent with the module: x (batch, seq, d_in), d_in = d_out = 32.
    batch, seq, d_in, d_out = 2, 8, 32, 32

    key = jax.random.PRNGKey(0)
    kx, kraw, kx2, kx3, kx4 = jax.random.split(key, 5)

    # Deterministic parameter init mirroring __init__:
    #   raw ~ Normal(mean=log(sqrt(2/d_in)), std=0.2), bias = zeros(d_out)
    mean = math.log(math.sqrt(2.0 / d_in))
    raw = mean + 0.2 * jax.random.normal(kraw, (d_out, d_in), dtype=jnp.float32)
    bias = jnp.zeros((d_out,), dtype=jnp.float32)

    def ref_fn(xv):
        return xv.astype(jnp.float32) @ jax.nn.softplus(raw).T + bias

    # 1) Module-shaped case: lane-packed single tile.
    x = jax.random.normal(kx, (batch, seq, d_in), dtype=jnp.float32)
    out = jax.block_until_ready(positive_linear_hk(x, raw, bias))
    assert out.shape == (batch, seq, d_out)
    assert jnp.allclose(out, ref_fn(x), atol=2e-5, rtol=2e-5)

    # 2) Row count not divisible by the pack factor (rare pad + slice path).
    x_odd = jax.random.normal(kx2, (5, d_in), dtype=jnp.float32)
    out_odd = jax.block_until_ready(positive_linear_hk(x_odd, raw, bias))
    assert out_odd.shape == (5, d_out)
    assert jnp.allclose(out_odd, ref_fn(x_odd), atol=2e-5, rtol=2e-5)

    # 3) Multi-tile grid with a ragged final block (no wrapper pad / slice).
    x_big = jax.random.normal(kx3, (10, seq, d_in), dtype=jnp.float32)
    out_big = jax.block_until_ready(
        positive_linear_hk(x_big, raw, bias, block_rows=8))
    assert out_big.shape == (10, seq, d_out)
    assert jnp.allclose(out_big, ref_fn(x_big), atol=2e-5, rtol=2e-5)

    # 4) bf16 activations: bf16 weight into the MXU, f32 accumulate
    #    (results match an f32 reference only to ~bf16 precision).
    x_bf = jax.random.normal(kx4, (batch, seq, d_in), dtype=jnp.bfloat16)
    out_bf = jax.block_until_ready(positive_linear_hk(x_bf, raw, bias))
    assert out_bf.shape == (batch, seq, d_out)
    assert jnp.allclose(out_bf.astype(jnp.float32), ref_fn(x_bf), atol=1e-1, rtol=1e-1)

    print("KERNEL_OK")
</pallas_src>

<mosaic_0001>
module attributes {stable_mosaic.version = 11 : i64} {
  func.func @_positive_linear_kernel(%arg0: i32, %arg1: memref<4x128xf32, #tpu.memory_space<vmem>>, %arg2: memref<128x128xf32, #tpu.memory_space<vmem>>, %arg3: memref<1x128xf32, #tpu.memory_space<vmem>>, %arg4: memref<4x128xf32, #tpu.memory_space<vmem>>) attributes {dimension_semantics = [#tpu.dimension_semantics<parallel>], iteration_bounds = array<i64: 1>, scalar_prefetch = 0 : i64, scratch_operands = 0 : i64, tpu.core_type = #tpu.core_type<tc>, window_params = [{transform_indices = @transform_0, window_bounds = array<i64: 4, 128>}, {pipeline_mode = #tpu.pipeline_mode<synchronous>, transform_indices = @transform_1, window_bounds = array<i64: 128, 128>}, {pipeline_mode = #tpu.pipeline_mode<synchronous>, transform_indices = @transform_2, window_bounds = array<i64: 1, 128>}, {transform_indices = @transform_3, window_bounds = array<i64: 4, 128>}]} {
    %c0 = arith.constant 0 : index
    %c0_0 = arith.constant 0 : index
    %0 = vector.load %arg1[%c0, %c0_0] : memref<4x128xf32, #tpu.memory_space<vmem>>, vector<4x128xf32>
    %c0_1 = arith.constant 0 : index
    %c0_2 = arith.constant 0 : index
    %1 = vector.load %arg2[%c0_1, %c0_2] : memref<128x128xf32, #tpu.memory_space<vmem>>, vector<128x128xf32>
    %cst = arith.constant dense<0.000000e+00> : vector<4x128xf32>
    %2 = tpu.matmul %0, %1, %cst {dimension_numbers = #tpu.dot_dimension_numbers<[1], [1], [0], [0], [0, 0, 1, 0], [], []>} : vector<4x128xf32>, vector<128x128xf32>, vector<4x128xf32> -> vector<4x128xf32>
    %c0_3 = arith.constant 0 : index
    %c0_4 = arith.constant 0 : index
    %3 = vector.load %arg3[%c0_3, %c0_4] : memref<1x128xf32, #tpu.memory_space<vmem>>, vector<1x128xf32>
    %4 = vector.broadcast %3 : vector<1x128xf32> to vector<4x128xf32>
    %5 = arith.addf %2, %4 : vector<4x128xf32>
    %c0_5 = arith.constant 0 : index
    %c0_6 = arith.constant 0 : index
    %6 = vector.load %arg4[%c0_5, %c0_6] : memref<4x128xf32, #tpu.memory_space<vmem>>, vector<4x128xf32>
    tpu.vector_store %arg4[%c0_5, %c0_6], %5 {strides = array<i32>} : memref<4x128xf32, #tpu.memory_space<vmem>>, vector<4x128xf32>,
    return
  }
  func.func @transform_0(%arg0: i32) -> (i32, i32) {
    %c0_i32 = arith.constant 0 : i32
    %c0_i32_0 = arith.constant 0 : i32
    return %arg0, %c0_i32 : i32, i32
  }
  func.func @transform_1(%arg0: i32) -> (i32, i32) {
    %c0_i32 = arith.constant 0 : i32
    %c0_i32_0 = arith.constant 0 : i32
    %c0_i32_1 = arith.constant 0 : i32
    return %c0_i32, %c0_i32_0 : i32, i32
  }
  func.func @transform_2(%arg0: i32) -> (i32, i32) {
    %c0_i32 = arith.constant 0 : i32
    %c0_i32_0 = arith.constant 0 : i32
    %c0_i32_1 = arith.constant 0 : i32
    return %c0_i32, %c0_i32_0 : i32, i32
  }
  func.func @transform_3(%arg0: i32) -> (i32, i32) {
    %c0_i32 = arith.constant 0 : i32
    %c0_i32_0 = arith.constant 0 : i32
    return %arg0, %c0_i32 : i32, i32
  }
}

</mosaic_0001>

<llo_original>
// kernel: positive_linear_hk.1
$region0: #{positive_linear_hk.1}
  #allocation0 [shape = 'u32[]', space=smem, size = 0x4, offset = 0x4, fixed_abs, tag = 'smem constant byte address 0x4 - core index']
  #allocation1 [shape = 'u32[144,128]{1,0:T(1,128)}', space=vmem, size = 0x12000, scoped, tag = 'internal scratch']
  %s0 = inlined_call_operand.vmem [shape: f32[4,128], index: 0, kind: input, shape index: {}]
  %s1 = inlined_call_operand.vmem [shape: f32[128,128], index: 1, kind: input, shape index: {}]
  %s2 = inlined_call_operand.vmem [shape: f32[1,128], index: 2, kind: input, shape index: {}]
  %s3 = inlined_call_operand.vmem [shape: f32[4,128], index: 3, kind: output, shape index: {}]
  %s4 = sld [smem:[#allocation0]]
  $region22: #{positive_linear_hk.1} parent=0
    _
  %s6 = ssub.s32 1, %s4
  %s7 = scalar_select 0, %s6, %s4
  // Predicated region
  $region2: #{positive_linear_hk.1} parent=0 // pred_check
    _
  $region3: #{positive_linear_hk.1} parent=0 // pred_check_branch
    %9 = sbr.rel (0) target = $region5
  $region4: #{positive_linear_hk.1} parent=0 // pred_region
    _
  $region5: #{positive_linear_hk.1} parent=0 // pred_fallthru
    _
  // Predicated region
  $region6: #{positive_linear_hk.1} parent=0 // pred_check
    _
  $region7: #{positive_linear_hk.1} parent=0 // pred_check_branch
    %11 = sbr.rel (0) target = $region9
  $region8: #{positive_linear_hk.1} parent=0 // pred_region
    _
  $region9: #{positive_linear_hk.1} parent=0 // pred_fallthru
    _
  // Predicated region
  $region10: #{positive_linear_hk.1} parent=0 // pred_check
    _
  $region11: #{positive_linear_hk.1} parent=0 // pred_check_branch
    %13 = sbr.rel (0) target = $region13
  $region12: #{positive_linear_hk.1} parent=0 // pred_region
    _
  $region13: #{positive_linear_hk.1} parent=0 // pred_fallthru
    _
  %v14 = vld [vmem:[%s0] sm:$0xf]
  %v15 = vld [vmem:[%s1] sm:$0xff]
  %v16 = vld [vmem:[%s1 + $0x8] sm:$0xff]
  %v17 = vld [vmem:[%s1 + $0x10] sm:$0xff]
  %v18 = vld [vmem:[%s1 + $0x18] sm:$0xff]
  %v19 = vld [vmem:[%s1 + $0x20] sm:$0xff]
  %v20 = vld [vmem:[%s1 + $0x28] sm:$0xff]
  %v21 = vld [vmem:[%s1 + $0x30] sm:$0xff]
  %v22 = vld [vmem:[%s1 + $0x38] sm:$0xff]
  %v23 = vld [vmem:[%s1 + $0x40] sm:$0xff]
  %v24 = vld [vmem:[%s1 + $0x48] sm:$0xff]
  %v25 = vld [vmem:[%s1 + $0x50] sm:$0xff]
  %v26 = vld [vmem:[%s1 + $0x58] sm:$0xff]
  %v27 = vld [vmem:[%s1 + $0x60] sm:$0xff]
  %v28 = vld [vmem:[%s1 + $0x68] sm:$0xff]
  %v29 = vld [vmem:[%s1 + $0x70] sm:$0xff]
  %v30 = vld [vmem:[%s1 + $0x78] sm:$0xff]
  %v31 = vld [vmem:[%s2] sm:$0x1]
  %v33 = vlaneseq
  %v34 = vshrl.u32 %v33, 7
  %v35 = vsub.s32 0, %v34
  %v36 = vrot.slane %v31, %v35
  %38 = vmatprep.subr.mxu0 0.0
  %39 = vmatpush1.xpose.msra.mxu0 %v15
  %40 = vmatprep.subr.mxu0 0.0
  %41 = vmatpush1.xpose.msra.mxu0 %v16
  %42 = vmatprep.subr.mxu0 0.0
  %43 = vmatpush1.xpose.msra.mxu0 %v17
  %44 = vmatprep.subr.mxu0 0.0
  %45 = vmatpush1.xpose.msra.mxu0 %v18
  %46 = vmatprep.subr.mxu0 0.0
  %47 = vmatpush1.xpose.msra.mxu0 %v19
  %48 = vmatprep.subr.mxu0 0.0
  %49 = vmatpush1.xpose.msra.mxu0 %v20
  %50 = vmatprep.subr.mxu0 0.0
  %51 = vmatpush1.xpose.msra.mxu0 %v21
  %52 = vmatprep.subr.mxu0 0.0
  %53 = vmatpush1.xpose.msra.mxu0 %v22
  %54 = vmatprep.subr.mxu0 0.0
  %55 = vmatpush1.xpose.msra.mxu0 %v23
  %56 = vmatprep.subr.mxu0 0.0
  %57 = vmatpush1.xpose.msra.mxu0 %v24
  %58 = vmatprep.subr.mxu0 0.0
  %59 = vmatpush1.xpose.msra.mxu0 %v25
  %60 = vmatprep.subr.mxu0 0.0
  %61 = vmatpush1.xpose.msra.mxu0 %v26
  %62 = vmatprep.subr.mxu0 0.0
  %63 = vmatpush1.xpose.msra.mxu0 %v27
  %64 = vmatprep.subr.mxu0 0.0
  %65 = vmatpush1.xpose.msra.mxu0 %v28
  %66 = vmatprep.subr.mxu0 0.0
  %67 = vmatpush1.xpose.msra.mxu0 %v29
  %68 = vmatprep.subr.mxu0 0.0
  %69 = vmatpush1.xpose.msra.mxu0 %v30
  %70 = vmatprep.subr.mxu0 0.0
  %71 = vmatpush1.xpose.msra.mxu0 0.0
  %72 = vmatprep.subr.mxu0 0.0
  %73 = vmatpush1.xpose.msra.mxu0 0.0
  %74 = vmatprep.subr.mxu0 0.0
  %75 = vmatpush1.xpose.msra.mxu0 0.0
  %76 = vmatprep.subr.mxu0 0.0
  %77 = vmatpush1.xpose.msra.mxu0 0.0
  %78 = vmatprep.subr.mxu0 0.0
  %79 = vmatpush1.xpose.msra.mxu0 0.0
  %80 = vmatprep.subr.mxu0 0.0
  %81 = vmatpush1.xpose.msra.mxu0 0.0
  %82 = vmatprep.subr.mxu0 0.0
  %83 = vmatpush1.xpose.msra.mxu0 0.0
  %84 = vmatprep.subr.mxu0 0.0
  %85 = vmatpush1.xpose.msra.mxu0 0.0
  %86 = vmatprep.subr.mxu0 0.0
  %87 = vmatpush1.xpose.msra.mxu0 0.0
  %88 = vmatprep.subr.mxu0 0.0
  %89 = vmatpush1.xpose.msra.mxu0 0.0
  %90 = vmatprep.subr.mxu0 0.0
  %91 = vmatpush1.xpose.msra.mxu0 0.0
  %92 = vmatprep.subr.mxu0 0.0
  %93 = vmatpush1.xpose.msra.mxu0 0.0
  %94 = vmatprep.subr.mxu0 0.0
  %95 = vmatpush1.xpose.msra.mxu0 0.0
  %96 = vmatprep.subr.mxu0 0.0
  %97 = vmatpush1.xpose.msra.mxu0 0.0
  %98 = vmatprep.subr.mxu0 0.0
  %99 = vmatpush1.xpose.msra.mxu0 0.0
  %100 = vmatprep.subr.mxu0 0.0
  %101 = vmatpush1.xpose.msra.mxu0 0.0
  %102 = vmatprep.mubr.f32.mxu0 0.0
  %103 = vmatmul.mubr.f32.gmra.mrb[0].mxu0 %v14
  %v104 = vpop.f32.mrb[0].mxu0
  %v105 = vadd.f32 %v36, %v104
  %v106 = vpop.f32.mrb[0].mxu0
  %107 = vdwg.mxu0
  %108 = vst [vmem:[%s3] sm:$0xf] %v105
  // Predicated region
  $region14: #{positive_linear_hk.1} parent=0 // pred_check
    _
  $region15: #{positive_linear_hk.1} parent=0 // pred_check_branch
    %110 = sbr.rel (0) target = $region17
  $region16: #{positive_linear_hk.1} parent=0 // pred_region
    _
  $region17: #{positive_linear_hk.1} parent=0 // pred_fallthru
    _
  // Predicated region
  $region18: #{positive_linear_hk.1} parent=0 // pred_check
    _
  $region19: #{positive_linear_hk.1} parent=0 // pred_check_branch
    %112 = sbr.rel (0) target = $region21
  $region20: #{positive_linear_hk.1} parent=0 // pred_region
    _
  $region21: #{positive_linear_hk.1} parent=0 // pred_fallthru
    _

</llo_original>
